<compile_context>
chip_gen: v7x
topology: tpu7x:2x2x1
jax: 0.10.0
libtpu: 0.0.40
codegen_flags: <defaults>
</compile_context>

<pallas_src>
import functools

import jax
import jax.numpy as jnp
from jax.experimental import pallas as pl
from jax.experimental.pallas import tpu as pltpu


# --------------------------------------------------------------------------
# Kernels
# --------------------------------------------------------------------------
def _gct_kernel_chw(x_ref, p_ref, o_ref, *, eps, mode, after_relu):
    """Single-pass GCT. x block: (nb, C, HW); params: (C, 3) = [alpha|gamma|beta]."""
    x = x_ref[...]                                   # (nb, C, HW), input dtype
    xf = x.astype(jnp.float32)                       # f32 only for reductions
    p = p_ref[...]                                   # (C, 3) f32
    alpha = p[:, 0:1][None]                          # (1, C, 1)
    gamma = p[:, 1:2][None]
    beta = p[:, 2:3][None]

    if mode == "l2":
        ss = jnp.sum(xf * xf, axis=-1, keepdims=True)               # (nb, C, 1)
        embedding = jnp.sqrt(ss + eps) * alpha
        mean_e2 = jnp.mean(embedding * embedding, axis=1, keepdims=True)
        norm = gamma * jax.lax.rsqrt(mean_e2 + eps)
    else:  # "l1"
        xr = xf if after_relu else jnp.abs(xf)
        s = jnp.sum(xr, axis=-1, keepdims=True)
        embedding = s * alpha
        mean_abs = jnp.mean(jnp.abs(embedding), axis=1, keepdims=True)
        norm = gamma / (mean_abs + eps)

    gate = 1.0 + jnp.tanh(embedding * norm + beta)                  # (nb, C, 1) f32
    # Apply the gate in the input dtype (halves VPU work / vreg pressure for bf16).
    o_ref[...] = (x * gate.astype(x.dtype)).astype(o_ref.dtype)


def _gct_kernel_hwc(x_ref, p_ref, o_ref, *, eps, mode, after_relu):
    """Single-pass GCT with channels on lanes. x block: (nb, HW, C); params: (3, C)."""
    x = x_ref[...]                                   # (nb, HW, C)
    xf = x.astype(jnp.float32)
    p = p_ref[...]                                   # (3, C) f32
    alpha = p[0:1, :][None]                          # (1, 1, C)
    gamma = p[1:2, :][None]
    beta = p[2:3, :][None]

    if mode == "l2":
        ss = jnp.sum(xf * xf, axis=1, keepdims=True)                # (nb, 1, C)
        embedding = jnp.sqrt(ss + eps) * alpha
        mean_e2 = jnp.mean(embedding * embedding, axis=-1, keepdims=True)
        norm = gamma * jax.lax.rsqrt(mean_e2 + eps)
    else:  # "l1"
        xr = xf if after_relu else jnp.abs(xf)
        s = jnp.sum(xr, axis=1, keepdims=True)
        embedding = s * alpha
        mean_abs = jnp.mean(jnp.abs(embedding), axis=-1, keepdims=True)
        norm = gamma / (mean_abs + eps)

    gate = 1.0 + jnp.tanh(embedding * norm + beta)                  # (nb, 1, C)
    o_ref[...] = (x * gate.astype(x.dtype)).astype(o_ref.dtype)


def _gct_reduce_kernel(x_ref, s_ref, *, mode, after_relu):
    """Two-pass, pass 1: per-channel sum / sum-of-squares accumulated over HW tiles."""
    xf = x_ref[...].astype(jnp.float32)              # (1, C, hw_tile)
    if mode == "l2":
        part = jnp.sum(xf * xf, axis=-1, keepdims=True)             # (1, C, 1)
    else:
        xr = xf if after_relu else jnp.abs(xf)
        part = jnp.sum(xr, axis=-1, keepdims=True)

    @pl.when(pl.program_id(1) == 0)
    def _():
        s_ref[...] = jnp.zeros_like(s_ref)

    s_ref[...] += part


def _gct_scale_kernel(x_ref, g_ref, o_ref):
    """Two-pass, pass 2: x * gate over lane-dense HW tiles."""
    x = x_ref[...]                                   # (1, C, hw_tile)
    o_ref[...] = (x * g_ref[...].astype(x.dtype)).astype(o_ref.dtype)


# --------------------------------------------------------------------------
# Wrapper helpers
# --------------------------------------------------------------------------
def _vmem_capacity_bytes():
    try:
        info = pltpu.get_tpu_info()
        for attr in ("vmem_capacity_bytes", "vmem_bytes", "vmem_size_bytes"):
            v = getattr(info, attr, None)
            if isinstance(v, int) and v > 0:
                return v
    except Exception:
        pass
    return 64 * 1024 * 1024  # conservative default (v7x per-TC VMEM)


def _choose_channels_on_lanes(c, hw):
    if hw % 128 == 0:
        return False           # (N, C, HW): HW already lane-dense
    if c % 128 == 0:
        return True            # (N, HW, C): keep C on lanes (7x7 / 14x14 maps)
    return c > hw               # neither aligned: put the larger axis on lanes


def _largest_divisor_leq(n, cap):
    cap = max(1, min(int(n), int(cap)))
    for d in range(cap, 0, -1):
        if n % d == 0:
            return d
    return 1


def _pick_hw_tile(hw, c, itemsize, budget):
    """Largest multiple-of-128 divisor of hw whose (C, tile) block fits budget."""
    if hw % 128 != 0:
        return None
    max_tile = budget // max(1, c * itemsize)
    best = None
    t = 128
    while t <= hw:
        if hw % t == 0 and t <= max_tile:
            best = t
        t += 128
    return best


# --------------------------------------------------------------------------
# Public entry point
# --------------------------------------------------------------------------
def gct_pallas(x, alpha, gamma, beta, *, epsilon=1e-5, mode="l2",
               after_relu=False, _max_block_bytes=None):
    """GCT forward.

    Args:
      x: (N, C, H, W) array (NCHW, matching the PyTorch module).
      alpha, gamma, beta: (1, C, 1, 1) parameters.
      _max_block_bytes: test-only override of the per-block VMEM budget.
    Returns:
      (N, C, H, W) array, same dtype as x.
    """
    if mode not in ("l2", "l1"):
        raise ValueError("Unknown mode!")

    n, c, h, w = x.shape
    hw = h * w
    itemsize = jnp.dtype(x.dtype).itemsize
    eps = float(epsilon)

    a = alpha.reshape(c).astype(jnp.float32)
    g = gamma.reshape(c).astype(jnp.float32)
    b = beta.reshape(c).astype(jnp.float32)

    vmem_cap = _vmem_capacity_bytes()
    block_budget = (vmem_cap // 8) if _max_block_bytes is None else int(_max_block_bytes)

    sample_bytes = c * hw * itemsize
    # live VMEM multiplier of the input-block bytes:
    #   2x input (double-buffered) + 2x output (double-buffered) + f32 working copy
    f32_mult = max(1, 4 // itemsize)
    live_mult = 4 + f32_mult

    use_two_pass = sample_bytes > block_budget
    hw_tile = None
    if use_two_pass:
        hw_tile = _pick_hw_tile(hw, c, itemsize, block_budget)
        if hw_tile is None:
            # TODO(synk): HW with no 128-aligned divisor that fits the budget
            # falls back to the (possibly oversized) single-pass path.
            use_two_pass = False

    # ---------------- single-pass: whole sample(s) per grid step ------------
    if not use_two_pass:
        channels_on_lanes = _choose_channels_on_lanes(c, hw)
        # Batch small samples per grid step (amortize ~0.35us/step), keep the
        # block at <= ~4 MiB so double-buffering headroom remains.
        batch_cap = max(1, min(block_budget, 4 << 20) // max(1, sample_bytes))
        nb = _largest_divisor_leq(n, batch_cap)
        block_bytes = nb * sample_bytes
        needed = live_mult * block_bytes + (2 << 20)
        vmem_limit = int(min(int(0.9 * vmem_cap), max(needed, 32 << 20)))

        if channels_on_lanes:
            x3 = jnp.transpose(x, (0, 2, 3, 1)).reshape(n, hw, c)   # (N, HW, C)
            params = jnp.stack([a, g, b], axis=0)                    # (3, C)
            kernel = functools.partial(_gct_kernel_hwc, eps=eps, mode=mode,
                                       after_relu=after_relu)
            blk = (nb, hw, c)
            p_spec = pl.BlockSpec((3, c), lambda i: (0, 0))
        else:
            x3 = x.reshape(n, c, hw)                                 # (N, C, HW)
            params = jnp.stack([a, g, b], axis=1)                    # (C, 3)
            kernel = functools.partial(_gct_kernel_chw, eps=eps, mode=mode,
                                       after_relu=after_relu)
            blk = (nb, c, hw)
            p_spec = pl.BlockSpec((c, 3), lambda i: (0, 0))

        out3 = pl.pallas_call(
            kernel,
            out_shape=jax.ShapeDtypeStruct(x3.shape, x.dtype),
            grid_spec=pltpu.PrefetchScalarGridSpec(
                num_scalar_prefetch=0,
                grid=(n // nb,),
                in_specs=[pl.BlockSpec(blk, lambda i: (i, 0, 0)), p_spec],
                out_specs=pl.BlockSpec(blk, lambda i: (i, 0, 0)),
            ),
            compiler_params=pltpu.CompilerParams(
                dimension_semantics=("parallel",),
                vmem_limit_bytes=vmem_limit),
        )(x3, params)

        if channels_on_lanes:
            return out3.reshape(n, h, w, c).transpose(0, 3, 1, 2)
        return out3.reshape(n, c, h, w)

    # ---------------- two-pass fallback for large samples -------------------
    x3 = x.reshape(n, c, hw)
    n_t = hw // hw_tile
    tile_bytes = c * hw_tile * itemsize
    needed = live_mult * tile_bytes + (2 << 20)
    vmem_limit = int(min(int(0.9 * vmem_cap), max(needed, 32 << 20)))

    # Pass 1: per-sample, per-channel sum (l1) / sum-of-squares (l2).
    reduce_kernel = functools.partial(_gct_reduce_kernel, mode=mode,
                                      after_relu=after_relu)
    sums = pl.pallas_call(
        reduce_kernel,
        out_shape=jax.ShapeDtypeStruct((n, c, 1), jnp.float32),
        grid_spec=pltpu.PrefetchScalarGridSpec(
            num_scalar_prefetch=0,
            grid=(n, n_t),
            in_specs=[pl.BlockSpec((1, c, hw_tile), lambda i, t: (i, 0, t))],
            out_specs=pl.BlockSpec((1, c, 1), lambda i, t: (i, 0, 0)),
        ),
        compiler_params=pltpu.CompilerParams(
            dimension_semantics=("parallel", "arbitrary"),
            vmem_limit_bytes=vmem_limit),
    )(x3)

    # Tiny (N, C) gate computation done in plain JAX between the two passes.
    s = sums[:, :, 0]                                                # (N, C) f32
    if mode == "l2":
        embedding = jnp.sqrt(s + eps) * a[None, :]
        norm = g[None, :] * jax.lax.rsqrt(
            jnp.mean(embedding * embedding, axis=1, keepdims=True) + eps)
    else:
        embedding = s * a[None, :]
        norm = g[None, :] / (jnp.mean(jnp.abs(embedding), axis=1,
                                      keepdims=True) + eps)
    gate = (1.0 + jnp.tanh(embedding * norm + b[None, :]))[:, :, None]  # (N, C, 1)

    # Pass 2: fully parallel lane-dense scale.
    out3 = pl.pallas_call(
        _gct_scale_kernel,
        out_shape=jax.ShapeDtypeStruct((n, c, hw), x.dtype),
        grid_spec=pltpu.PrefetchScalarGridSpec(
            num_scalar_prefetch=0,
            grid=(n, n_t),
            in_specs=[pl.BlockSpec((1, c, hw_tile), lambda i, t: (i, 0, t)),
                      pl.BlockSpec((1, c, 1), lambda i, t: (i, 0, 0))],
            out_specs=pl.BlockSpec((1, c, hw_tile), lambda i, t: (i, 0, t)),
        ),
        compiler_params=pltpu.CompilerParams(
            dimension_semantics=("parallel", "parallel"),
            vmem_limit_bytes=vmem_limit),
    )(x3, gate)
    return out3.reshape(n, c, h, w)


# --------------------------------------------------------------------------
# Pure-JAX reference (mirrors the PyTorch module)
# --------------------------------------------------------------------------
def gct_reference(x, alpha, gamma, beta, *, epsilon=1e-5, mode="l2",
                  after_relu=False):
    xf = x.astype(jnp.float32)
    if mode == "l2":
        embedding = jnp.sqrt(
            jnp.sum(xf ** 2, axis=(2, 3), keepdims=True) + epsilon) * alpha
        norm = gamma / jnp.sqrt(
            jnp.mean(embedding ** 2, axis=1, keepdims=True) + epsilon)
    else:
        _x = xf if after_relu else jnp.abs(xf)
        embedding = jnp.sum(_x, axis=(2, 3), keepdims=True) * alpha
        norm = gamma / (jnp.mean(jnp.abs(embedding), axis=1, keepdims=True)
                        + epsilon)
    gate = 1.0 + jnp.tanh(embedding * norm + beta)
    return (xf * gate).astype(x.dtype)


# --------------------------------------------------------------------------
# Self-test
# --------------------------------------------------------------------------
if __name__ == "__main__":
    key = jax.random.PRNGKey(0)
    k1, k2, k3, k4, k5 = jax.random.split(key, 5)

    def params_for(c, kk):
        ka, kg, kb = jax.random.split(kk, 3)
        # Non-trivial values (the PyTorch init of ones/zeros makes gate == 1).
        alpha = 1.0 + 0.1 * jax.random.normal(ka, (1, c, 1, 1), jnp.float32)
        gamma = 0.5 * jax.random.normal(kg, (1, c, 1, 1), jnp.float32)
        beta = 0.1 * jax.random.normal(kb, (1, c, 1, 1), jnp.float32)
        return alpha, gamma, beta

    # 1) l2, HW-lane-dense single-pass path (HW = 256, multiple of 128).
    x1 = jax.random.normal(k1, (2, 4, 16, 16), jnp.float32)
    a1, g1, b1 = params_for(4, k2)
    out = jax.block_until_ready(gct_pallas(x1, a1, g1, b1, mode="l2"))
    ref = gct_reference(x1, a1, g1, b1, mode="l2")
    assert out.shape == x1.shape
    assert jnp.allclose(out, ref, atol=1e-5, rtol=1e-5), "l2 single-pass mismatch"

    # 2) l2, forced two-pass (reduce + scale) path via a tiny VMEM budget.
    out = jax.block_until_ready(
        gct_pallas(x1, a1, g1, b1, mode="l2", _max_block_bytes=2048))
    assert jnp.allclose(out, ref, atol=1e-5, rtol=1e-5), "l2 two-pass mismatch"

    # 3) l1, channels-on-lanes layout (C = 128, HW = 49).
    x2 = jax.random.normal(k3, (2, 128, 7, 7), jnp.float32)
    a2, g2, b2 = params_for(128, k4)
    out = jax.block_until_ready(gct_pallas(x2, a2, g2, b2, mode="l1"))
    ref = gct_reference(x2, a2, g2, b2, mode="l1")
    assert jnp.allclose(out, ref, atol=1e-5, rtol=1e-5), "l1 hwc mismatch"

    # 4) l1 with after_relu=True on a non-negative input.
    x2r = jnp.maximum(x2, 0.0)
    out = jax.block_until_ready(
        gct_pallas(x2r, a2, g2, b2, mode="l1", after_relu=True))
    ref = gct_reference(x2r, a2, g2, b2, mode="l1", after_relu=True)
    assert jnp.allclose(out, ref, atol=1e-5, rtol=1e-5), "l1 after_relu mismatch"

    # 5) bf16 input: f32 reduction stats, gate applied in bf16.
    x3 = jax.random.normal(k5, (2, 8, 8, 8), jnp.float32).astype(jnp.bfloat16)
    a3, g3, b3 = params_for(8, k2)
    out = jax.block_until_ready(gct_pallas(x3, a3, g3, b3, mode="l2"))
    ref = gct_reference(x3, a3, g3, b3, mode="l2")
    assert out.dtype == jnp.bfloat16
    assert jnp.allclose(out.astype(jnp.float32), ref.astype(jnp.float32),
                        atol=5e-2, rtol=5e-2), "bf16 mismatch"

    print("KERNEL_OK")
</pallas_src>

<mosaic_0001>
module attributes {stable_mosaic.version = 11 : i64} {
  func.func @_gct_kernel_chw(%arg0: i32, %arg1: memref<2x4x256xf32, #tpu.memory_space<vmem>>, %arg2: memref<4x3xf32, #tpu.memory_space<vmem>>, %arg3: memref<2x4x256xf32, #tpu.memory_space<vmem>>) attributes {dimension_semantics = [#tpu.dimension_semantics<parallel>], iteration_bounds = array<i64: 1>, scalar_prefetch = 0 : i64, scratch_operands = 0 : i64, tpu.core_type = #tpu.core_type<tc>, window_params = [{transform_indices = @transform_0, window_bounds = array<i64: 2, 4, 256>}, {pipeline_mode = #tpu.pipeline_mode<synchronous>, transform_indices = @transform_1, window_bounds = array<i64: 4, 3>}, {transform_indices = @transform_2, window_bounds = array<i64: 2, 4, 256>}]} {
    %c0 = arith.constant 0 : index
    %c0_0 = arith.constant 0 : index
    %c0_1 = arith.constant 0 : index
    %0 = vector.load %arg1[%c0, %c0_0, %c0_1] : memref<2x4x256xf32, #tpu.memory_space<vmem>>, vector<2x4x256xf32>
    %c0_2 = arith.constant 0 : index
    %c0_3 = arith.constant 0 : index
    %1 = vector.load %arg2[%c0_2, %c0_3] : memref<4x3xf32, #tpu.memory_space<vmem>>, vector<4x3xf32>
    %2 = vector.extract_strided_slice %1 {offsets = [0, 0], sizes = [4, 1], strides = [1, 1]} : vector<4x3xf32> to vector<4x1xf32>
    %3 = vector.shape_cast %2 : vector<4x1xf32> to vector<1x4x1xf32>
    %4 = vector.extract_strided_slice %1 {offsets = [0, 1], sizes = [4, 1], strides = [1, 1]} : vector<4x3xf32> to vector<4x1xf32>
    %5 = vector.shape_cast %4 : vector<4x1xf32> to vector<1x4x1xf32>
    %6 = vector.extract_strided_slice %1 {offsets = [0, 2], sizes = [4, 1], strides = [1, 1]} : vector<4x3xf32> to vector<4x1xf32>
    %7 = vector.shape_cast %6 : vector<4x1xf32> to vector<1x4x1xf32>
    %8 = arith.mulf %0, %0 : vector<2x4x256xf32>
    %cst = arith.constant dense<0.000000e+00> : vector<2x4xf32>
    %9 = vector.multi_reduction <add>, %8, %cst [2] : vector<2x4x256xf32> to vector<2x4xf32>
    %10 = vector.shape_cast %9 : vector<2x4xf32> to vector<2x4x1xf32>
    %cst_4 = arith.constant 9.99999974E-6 : f32
    %11 = vector.broadcast %cst_4 : f32 to vector<2x4x1xf32>
    %12 = arith.addf %10, %11 : vector<2x4x1xf32>
    %13 = math.sqrt %12 : vector<2x4x1xf32>
    %14 = vector.broadcast %3 : vector<1x4x1xf32> to vector<2x4x1xf32>
    %15 = arith.mulf %13, %14 : vector<2x4x1xf32>
    %16 = arith.mulf %15, %15 : vector<2x4x1xf32>
    %cst_5 = arith.constant dense<0.000000e+00> : vector<2x1xf32>
    %17 = vector.multi_reduction <add>, %16, %cst_5 [1] : vector<2x4x1xf32> to vector<2x1xf32>
    %18 = vector.shape_cast %17 : vector<2x1xf32> to vector<2x1x1xf32>
    %cst_6 = arith.constant 4.000000e+00 : f32
    %19 = vector.broadcast %cst_6 : f32 to vector<2x1x1xf32>
    %20 = arith.divf %18, %19 : vector<2x1x1xf32>
    %cst_7 = arith.constant 9.99999974E-6 : f32
    %21 = vector.broadcast %cst_7 : f32 to vector<2x1x1xf32>
    %22 = arith.addf %20, %21 : vector<2x1x1xf32>
    %23 = math.rsqrt %22 : vector<2x1x1xf32>
    %24 = vector.broadcast %5 : vector<1x4x1xf32> to vector<2x4x1xf32>
    %25 = vector.broadcast %23 : vector<2x1x1xf32> to vector<2x4x1xf32>
    %26 = arith.mulf %24, %25 : vector<2x4x1xf32>
    %27 = arith.mulf %15, %26 : vector<2x4x1xf32>
    %28 = vector.broadcast %7 : vector<1x4x1xf32> to vector<2x4x1xf32>
    %29 = arith.addf %27, %28 : vector<2x4x1xf32>
    %30 = math.tanh %29 : vector<2x4x1xf32>
    %cst_8 = arith.constant 1.000000e+00 : f32
    %31 = vector.broadcast %cst_8 : f32 to vector<2x4x1xf32>
    %32 = arith.addf %31, %30 : vector<2x4x1xf32>
    %33 = vector.broadcast %32 : vector<2x4x1xf32> to vector<2x4x256xf32>
    %34 = arith.mulf %0, %33 : vector<2x4x256xf32>
    %c0_9 = arith.constant 0 : index
    %c0_10 = arith.constant 0 : index
    %c0_11 = arith.constant 0 : index
    %35 = vector.load %arg3[%c0_9, %c0_10, %c0_11] : memref<2x4x256xf32, #tpu.memory_space<vmem>>, vector<2x4x256xf32>
    tpu.vector_store %arg3[%c0_9, %c0_10, %c0_11], %34 {strides = array<i32>} : memref<2x4x256xf32, #tpu.memory_space<vmem>>, vector<2x4x256xf32>,
    return
  }
  func.func @transform_0(%arg0: i32) -> (i32, i32, i32) {
    %c0_i32 = arith.constant 0 : i32
    %c0_i32_0 = arith.constant 0 : i32
    %c0_i32_1 = arith.constant 0 : i32
    return %arg0, %c0_i32, %c0_i32_0 : i32, i32, i32
  }
  func.func @transform_1(%arg0: i32) -> (i32, i32) {
    %c0_i32 = arith.constant 0 : i32
    %c0_i32_0 = arith.constant 0 : i32
    %c0_i32_1 = arith.constant 0 : i32
    return %c0_i32, %c0_i32_0 : i32, i32
  }
  func.func @transform_2(%arg0: i32) -> (i32, i32, i32) {
    %c0_i32 = arith.constant 0 : i32
    %c0_i32_0 = arith.constant 0 : i32
    %c0_i32_1 = arith.constant 0 : i32
    return %arg0, %c0_i32, %c0_i32_0 : i32, i32, i32
  }
}

</mosaic_0001>

<llo_original>
// kernel: tpu_custom_call.1
$region0: #{tpu_custom_call.1}
  #allocation0 [shape = 'u32[]', space=smem, size = 0x4, offset = 0x4, fixed_abs, tag = 'smem constant byte address 0x4 - core index']
  #allocation1 [shape = 'u32[144,128]{1,0:T(1,128)}', space=vmem, size = 0x12000, scoped, tag = 'internal scratch']
  %s0 = inlined_call_operand.hbm [shape: f32[2,4,256], index: 0, kind: input, shape index: {}]
  %s1 = inlined_call_operand.hbm [shape: f32[4,3], index: 1, kind: input, shape index: {}]
  %s2 = inlined_call_operand.hbm [shape: f32[2,4,256], index: 2, kind: output, shape index: {}]
  %s3 = sld [smem:[#allocation0]]
  $region26: #{tpu_custom_call.1} parent=0
    _
  %s5 = ssub.s32 1, %s3
  %s6 = scalar_select 0, %s5, %s3
  $region1: #{tpu_custom_call.1} parent=0
    #allocation2 [shape = 'u8[8192]{0}', space=vmem, size = 0x2000, scoped, tag = 'input window, operand 0, single buffered']
    #allocation3 [shape = 's32[1]{0}', space=sflag, size = 0x4, scoped, tag = 'scoped memory for tpu_custom_call.1']
    #allocation4 [shape = 's32[1]{0}', space=sflag, size = 0x4, scoped, tag = 'scoped memory for tpu_custom_call.1']
    #allocation5 [shape = 'u8[2048]{0}', space=vmem, size = 0x800, scoped, tag = 'input window, operand 1, single buffered']
    #allocation6 [shape = 's32[1]{0}', space=sflag, size = 0x4, scoped, tag = 'scoped memory for tpu_custom_call.1']
    #allocation7 [shape = 'u8[8192]{0}', space=vmem, size = 0x2000, scoped, tag = 'output window, operand 0, single buffered']
    %7 = vsyncpa [#allocation3], 0
    %8 = vsyncpa [#allocation6], 0
    %9 = vsyncpa [#allocation4], 0
    // Predicated region
    $region2: #{tpu_custom_call.1} parent=1 // pred_check
      _
    $region3: #{tpu_custom_call.1} parent=1 // pred_check_branch
      %11 = sbr.rel (0) target = $region5
    $region4: #{tpu_custom_call.1} parent=1 // pred_region
      %s13 = ssub.s32 256, 256
      %14 = vsyncadd [#allocation3], %s13
      %s15 = sshll.u32 [#allocation2], 4
      %s16 = int_to_ptr.vmem [resolvable:$true] %s15
      %21 = dma.hbm_to_vmem [thread:$0]  %s0, 256, %s16, [#allocation3], 128, 128, 8
    $region5: #{tpu_custom_call.1} parent=1 // pred_fallthru
      _
    // Predicated region
    $region6: #{tpu_custom_call.1} parent=1 // pred_check
      _
    $region7: #{tpu_custom_call.1} parent=1 // pred_check_branch
      %23 = sbr.rel (0) target = $region9
    $region8: #{tpu_custom_call.1} parent=1 // pred_region
      %s25 = ssub.s32 64, 64
      %26 = vsyncadd [#allocation6], %s25
      %s28 = sshll.u32 [#allocation5], 4
      %s29 = int_to_ptr.vmem [resolvable:$true] %s28
      %31 = dma.hbm_to_vmem [thread:$0]  %s1, 64, %s29, [#allocation6]
    $region9: #{tpu_custom_call.1} parent=1 // pred_fallthru
      _
    // Predicated region
    $region10: #{tpu_custom_call.1} parent=1 // pred_check
      _
    $region11: #{tpu_custom_call.1} parent=1 // pred_check_branch
      %33 = sbr.rel (0) target = $region13
    $region12: #{tpu_custom_call.1} parent=1 // pred_region
      %34 = dma.done [#allocation3], 256
    $region13: #{tpu_custom_call.1} parent=1 // pred_fallthru
      _
    // Predicated region
    $region14: #{tpu_custom_call.1} parent=1 // pred_check
      _
    $region15: #{tpu_custom_call.1} parent=1 // pred_check_branch
      %36 = sbr.rel (0) target = $region17
    $region16: #{tpu_custom_call.1} parent=1 // pred_region
      %37 = dma.done [#allocation6], 64
    $region17: #{tpu_custom_call.1} parent=1 // pred_fallthru
      _
    %v38 = vld [vmem:[#allocation2] sm:$0xff]
    %v39 = vld [vmem:[#allocation2 + $0x8] sm:$0xff]
    %v40 = vld [vmem:[#allocation5] sm:$0xf]
    %v41 = vmul.f32 %v38, %v38
    %v42 = vmul.f32 %v39, %v39
    %v45 = vcombine.high %v41, %v41
    %v46 = vcombine.high %v42, %v42
    %vm49 = vcmask 1043456
    %v50 = vsel %vm49, %v41, 0.0
    %v51 = vsel %vm49, %v45, 0.0
    %v52 = vadd.f32 %v50, %v51
    %53 = vadd.xlane.f32.xlu0 %v52
    %v54 = vpop.xlane.xlu0 %53
    %v55 = vsel %vm49, %v42, 0.0
    %v56 = vsel %vm49, %v46, 0.0
    %v57 = vadd.f32 %v55, %v56
    %58 = vadd.xlane.f32.xlu0 %v57
    %v59 = vpop.xlane.xlu0 %58
    %v60 = vadd.f32 %v54, 1e-05
    %v61 = vadd.f32 %v59, 1e-05
    %v62 = vrsqrt.pop %v60
    %v63 = vmul.f32 %v60, %v62
    %vm64 = vcmp.eq.f32.partialorder %v60, inf
    %v65 = vsel %vm64, %v60, %v63
    %vm66 = vcmp.eq.f32.partialorder %v60, 0.0
    %v67 = vand.u32 %v60, 2147483648
    %v68 = vsel %vm66, %v67, %v65
    %v69 = vrsqrt.pop %v61
    %v70 = vmul.f32 %v61, %v69
    %vm71 = vcmp.eq.f32.partialorder %v61, inf
    %v72 = vsel %vm71, %v61, %v70
    %vm73 = vcmp.eq.f32.partialorder %v61, 0.0
    %v74 = vand.u32 %v61, 2147483648
    %v75 = vsel %vm73, %v74, %v72
    %v76 = vmul.f32 %v68, %v40
    %v77 = vmul.f32 %v75, %v40
    %v78 = vmul.f32 %v76, %v76
    %v79 = vmul.f32 %v77, %v77
    %vm80 = vcmask 3072
    %v81 = vsel %vm80, %v78, 0.0
    %v82 = vrot.slane %v81, 4
    %v83 = vadd.f32 %v81, %v82
    %v84 = vrot.slane %v83, 2
    %v85 = vadd.f32 %v83, %v84
    %v86 = vrot.slane %v85, 1
    %v87 = vadd.f32 %v85, %v86
    %v88 = vsel %vm80, %v79, 0.0
    %v89 = vrot.slane %v88, 4
    %v90 = vadd.f32 %v88, %v89
    %v91 = vrot.slane %v90, 2
    %v92 = vadd.f32 %v90, %v91
    %v93 = vrot.slane %v92, 1
    %v94 = vadd.f32 %v92, %v93
    %v95 = vrcp.pop 4.0
    %v96 = vmul.f32 %v87, %v95
    %v97 = vmul.f32 %v94, %v95
    %v98 = vadd.f32 %v96, 1e-05
    %v99 = vadd.f32 %v97, 1e-05
    %v100 = vrsqrt.pop %v98
    %v101 = vrsqrt.pop %v99
    %104 = vrot.lane.b32.xlu0 %v100, 1
    %v105 = vpop.permute.xlu0 %104
    %106 = vrot.lane.b32.xlu0 %v101, 1
    %v107 = vpop.permute.xlu0 %106
    %v110 = vmul.f32 %v40, %v105
    %v111 = vmul.f32 %v40, %v107
    %114 = vrot.lane.b32.xlu0 %v110, 127
    %v115 = vpop.permute.xlu0 %114
    %116 = vrot.lane.b32.xlu0 %v111, 127
    %v117 = vpop.permute.xlu0 %116
    %v120 = vmul.f32 %v76, %v115
    %v121 = vmul.f32 %v77, %v117
    %123 = vrot.lane.b32.xlu0 %v40, 126
    %v124 = vpop.permute.xlu0 %123
    %v126 = vadd.f32 %v120, %v124
    %v127 = vadd.f32 %v121, %v124
    %v128 = vtanh.pop %v126
    %v129 = vtanh.pop %v127
    %v130 = vadd.f32 %v128, 1.0
    %v131 = vadd.f32 %v129, 1.0
    %133 = vset.pattern.permute.xlu0 0
    %134 = vperm.xlu0 %133, %v130
    %v135 = vpop.permute.xlu0 %134
    %137 = vset.pattern.permute.xlu0 0
    %138 = vperm.xlu0 %137, %v131
    %v139 = vpop.permute.xlu0 %138
    %v141 = vunpack.c.l.s4 839922192
    %v142 = vunpack.c.0.s8 %v141
    %v143 = vlaneseq
    %v144 = vshrl.u32 %v143, 7
    %v145 = vsub.s32 %v142, %v144
    %v146 = vrot.slane %v135, %v145
    %v148 = vunpack.c.l.s4 839922192
    %v149 = vunpack.c.0.s8 %v148
    %v150 = vlaneseq
    %v151 = vshrl.u32 %v150, 7
    %v152 = vsub.s32 %v149, %v151
    %v153 = vrot.slane %v139, %v152
    %v156 = vmul.f32 %v38, %v146
    %v157 = vmul.f32 %v39, %v153
    %158 = vst [vmem:[#allocation7] sm:$0xff] %v156
    %159 = vst [vmem:[#allocation7 + $0x8] sm:$0xff] %v157
    // Predicated region
    $region18: #{tpu_custom_call.1} parent=1 // pred_check
      _
    $region19: #{tpu_custom_call.1} parent=1 // pred_check_branch
      %161 = sbr.rel (0) target = $region21
    $region20: #{tpu_custom_call.1} parent=1 // pred_region
      %s163 = ssub.s32 256, 256
      %164 = vsyncadd [#allocation4], %s163
      %s165 = sshll.u32 [#allocation7], 4
      %s166 = int_to_ptr.vmem [resolvable:$true] %s165
      %171 = dma.vmem_to_hbm [thread:$0]  %s166, 256, %s2, [#allocation4], 128, 128, 8
    $region21: #{tpu_custom_call.1} parent=1 // pred_fallthru
      _
    // Predicated region
    $region22: #{tpu_custom_call.1} parent=1 // pred_check
      _
    $region23: #{tpu_custom_call.1} parent=1 // pred_check_branch
      %173 = sbr.rel (0) target = $region25
    $region24: #{tpu_custom_call.1} parent=1 // pred_region
      %174 = dma.done [#allocation4], 256
    $region25: #{tpu_custom_call.1} parent=1 // pred_fallthru
      _
    %175 = vsyncpa [#allocation3], 1
    %176 = vsyncpa [#allocation6], 1
    %177 = vsyncpa [#allocation4], 1

</llo_original>
